<compile_context>
chip_gen: v7x
topology: tpu7x:2x2x1
jax: 0.10.0
libtpu: 0.0.40
codegen_flags: <defaults>
</compile_context>

<pallas_src>
import numpy as np
import jax
import jax.numpy as jnp
from jax.experimental import pallas as pl
from jax.experimental.pallas import tpu as pltpu


def _make_gather_kernel(jm):
    """Build a kernel with the (static) gather indices baked in."""

    def kernel(x_ref, o_ref):
        # One whole-tile load: (b_tile, J, D) -> vregs.
        x = x_ref[...]
        # In-vreg gather along the joint (sublane) axis.  All indices are
        # compile-time constants, so this lowers to static sublane selects
        # plus a single concatenate -- no per-row masked stores.
        gathered = jnp.concatenate([x[:, j:j + 1, :] for j in jm], axis=1)
        # One whole-tile store: (b_tile, J_out, D).
        o_ref[...] = gathered

    return kernel


def joint_mapper(joints, joint_maps=None, *, b_tile=None):
    """Pallas equivalent of JointMapper.forward.

    joints:     (B, J, D) array.
    joint_maps: None, or a sequence of integer joint indices (fixed at module
                init in the PyTorch module, i.e. compile-time constants here).
    b_tile:     optional batch tile size (auto-derived if None).
    returns:    joints unchanged if joint_maps is None, else the gathered
                (B, len(joint_maps), D) array.
    """
    if joint_maps is None:
        return joints

    B, J, D = joints.shape
    # joint_maps is a buffer fixed at __init__ -> treat as static indices.
    # (A traced/dynamic index vector would need a scalar-prefetch SMEM path.)
    jm = tuple(int(i) for i in np.asarray(joint_maps).reshape(-1))
    assert all(0 <= j < J for j in jm), "joint_maps index out of range"
    j_out = len(jm)

    if b_tile is None:
        # Size the batch tile against a conservative VMEM budget (v7x has the
        # smallest VMEM: 32 MiB scoped default / 64 MiB physical).  Inputs and
        # outputs are each double-buffered by the pipeline.
        itemsize = np.dtype(joints.dtype).itemsize
        bytes_per_row = 2 * (J + j_out) * D * itemsize  # in + out, x2 buffers
        vmem_budget = 16 * 1024 * 1024
        b_tile = int(max(1, min(B, vmem_budget // max(bytes_per_row, 1))))
    b_tile = min(b_tile, B)
    grid_b = pl.cdiv(B, b_tile)

    # Block covers the full J and D extents, so the (8, 128) tiling rule is
    # satisfied via the block-equals-full-array exception on those axes.
    return pl.pallas_call(
        _make_gather_kernel(jm),
        out_shape=jax.ShapeDtypeStruct((B, j_out, D), joints.dtype),
        grid=(grid_b,),
        in_specs=[pl.BlockSpec((b_tile, J, D), lambda i: (i, 0, 0))],
        out_specs=pl.BlockSpec((b_tile, j_out, D), lambda i: (i, 0, 0)),
        compiler_params=pltpu.CompilerParams(
            dimension_semantics=("parallel",)),
    )(joints)


if __name__ == "__main__":
    key = jax.random.PRNGKey(0)

    # Small shapes implied by the forward: joints = (batch, num_joints, 3).
    B, J, D = 2, 8, 3
    joints = jax.random.normal(key, (B, J, D), dtype=jnp.float32)

    # Deterministic joint mapping (the module's __init__ takes a plain list).
    joint_maps = [3, 0, 7, 2, 5, 1]

    out = jax.block_until_ready(joint_mapper(joints, joint_maps))

    # Reference: torch.index_select(joints, 1, joint_maps).
    ref = jnp.take(joints, jnp.asarray(joint_maps, dtype=jnp.int32), axis=1)
    assert out.shape == ref.shape and out.dtype == ref.dtype
    assert bool(jnp.array_equal(out, ref))

    # joint_maps=None passthrough branch.
    passthrough = jax.block_until_ready(joint_mapper(joints, None))
    assert bool(jnp.array_equal(passthrough, joints))

    # Exercise the batch-tiled / multi-grid-step path (v7x megacore sharding).
    B2 = 64
    joints_big = jax.random.normal(jax.random.PRNGKey(1), (B2, J, D),
                                   dtype=jnp.float32)
    out_big = jax.block_until_ready(
        joint_mapper(joints_big, joint_maps, b_tile=16))
    ref_big = jnp.take(joints_big, jnp.asarray(joint_maps, dtype=jnp.int32),
                       axis=1)
    assert bool(jnp.array_equal(out_big, ref_big))

    print("KERNEL_OK")
</pallas_src>

<mosaic_0001>
module attributes {stable_mosaic.version = 11 : i64} {
  func.func @kernel(%arg0: i32, %arg1: memref<2x8x3xf32, #tpu.memory_space<vmem>>, %arg2: memref<2x6x3xf32, #tpu.memory_space<vmem>>) attributes {dimension_semantics = [#tpu.dimension_semantics<parallel>], iteration_bounds = array<i64: 1>, scalar_prefetch = 0 : i64, scratch_operands = 0 : i64, tpu.core_type = #tpu.core_type<tc>, window_params = [{transform_indices = @transform_0, window_bounds = array<i64: 2, 8, 3>}, {transform_indices = @transform_1, window_bounds = array<i64: 2, 6, 3>}]} {
    %c0 = arith.constant 0 : index
    %c0_0 = arith.constant 0 : index
    %c0_1 = arith.constant 0 : index
    %0 = vector.load %arg1[%c0, %c0_0, %c0_1] : memref<2x8x3xf32, #tpu.memory_space<vmem>>, vector<2x8x3xf32>
    %1 = vector.extract_strided_slice %0 {offsets = [0, 3, 0], sizes = [2, 1, 3], strides = [1, 1, 1]} : vector<2x8x3xf32> to vector<2x1x3xf32>
    %2 = vector.extract_strided_slice %0 {offsets = [0, 0, 0], sizes = [2, 1, 3], strides = [1, 1, 1]} : vector<2x8x3xf32> to vector<2x1x3xf32>
    %3 = vector.extract_strided_slice %0 {offsets = [0, 7, 0], sizes = [2, 1, 3], strides = [1, 1, 1]} : vector<2x8x3xf32> to vector<2x1x3xf32>
    %4 = vector.extract_strided_slice %0 {offsets = [0, 2, 0], sizes = [2, 1, 3], strides = [1, 1, 1]} : vector<2x8x3xf32> to vector<2x1x3xf32>
    %5 = vector.extract_strided_slice %0 {offsets = [0, 5, 0], sizes = [2, 1, 3], strides = [1, 1, 1]} : vector<2x8x3xf32> to vector<2x1x3xf32>
    %6 = vector.extract_strided_slice %0 {offsets = [0, 1, 0], sizes = [2, 1, 3], strides = [1, 1, 1]} : vector<2x8x3xf32> to vector<2x1x3xf32>
    %7 = tpu.concatenate %1, %2, %3, %4, %5, %6 in 1 : vector<2x1x3xf32>, vector<2x1x3xf32>, vector<2x1x3xf32>, vector<2x1x3xf32>, vector<2x1x3xf32>, vector<2x1x3xf32> -> vector<2x6x3xf32>
    %c0_2 = arith.constant 0 : index
    %c0_3 = arith.constant 0 : index
    %c0_4 = arith.constant 0 : index
    %8 = vector.load %arg2[%c0_2, %c0_3, %c0_4] : memref<2x6x3xf32, #tpu.memory_space<vmem>>, vector<2x6x3xf32>
    tpu.vector_store %arg2[%c0_2, %c0_3, %c0_4], %7 {strides = array<i32>} : memref<2x6x3xf32, #tpu.memory_space<vmem>>, vector<2x6x3xf32>,
    return
  }
  func.func @transform_0(%arg0: i32) -> (i32, i32, i32) {
    %c0_i32 = arith.constant 0 : i32
    %c0_i32_0 = arith.constant 0 : i32
    %c0_i32_1 = arith.constant 0 : i32
    return %arg0, %c0_i32, %c0_i32_0 : i32, i32, i32
  }
  func.func @transform_1(%arg0: i32) -> (i32, i32, i32) {
    %c0_i32 = arith.constant 0 : i32
    %c0_i32_0 = arith.constant 0 : i32
    %c0_i32_1 = arith.constant 0 : i32
    return %arg0, %c0_i32, %c0_i32_0 : i32, i32, i32
  }
}

</mosaic_0001>

<llo_original>
// kernel: tpu_custom_call.1
$region0: #{tpu_custom_call.1}
  #allocation0 [shape = 'u32[]', space=smem, size = 0x4, offset = 0x4, fixed_abs, tag = 'smem constant byte address 0x4 - core index']
  #allocation1 [shape = 'u32[144,128]{1,0:T(1,128)}', space=vmem, size = 0x12000, scoped, tag = 'internal scratch']
  %s0 = inlined_call_operand.vmem [shape: f32[2,8,3], index: 0, kind: input, shape index: {}]
  %s1 = inlined_call_operand.vmem [shape: f32[2,6,3], index: 1, kind: output, shape index: {}]
  %s2 = sld [smem:[#allocation0]]
  $region14: #{tpu_custom_call.1} parent=0
    _
  %s4 = ssub.s32 1, %s2
  %s5 = scalar_select 0, %s4, %s2
  // Predicated region
  $region2: #{tpu_custom_call.1} parent=0 // pred_check
    _
  $region3: #{tpu_custom_call.1} parent=0 // pred_check_branch
    %7 = sbr.rel (0) target = $region5
  $region4: #{tpu_custom_call.1} parent=0 // pred_region
    _
  $region5: #{tpu_custom_call.1} parent=0 // pred_fallthru
    _
  %v8 = vld [vmem:[%s0] sm:$0xff]
  %v9 = vld [vmem:[%s0 + $0x8] sm:$0xff]
  %v12 = vrot.slane %v8, 3
  %v13 = vrot.slane %v9, 3
  %v16 = vrot.slane %v8, 7
  %v17 = vrot.slane %v9, 7
  %v20 = vrot.slane %v8, 5
  %v21 = vrot.slane %v9, 5
  %v24 = vrot.slane %v8, 1
  %v25 = vrot.slane %v9, 1
  %v28 = vrot.slane %v8, 4
  %v29 = vrot.slane %v9, 4
  %vm32 = vcmask 1040384
  %v33 = vsel %vm32, %v12, %v16
  %v34 = vsel %vm32, %v13, %v17
  %vm35 = vcmask 1041408
  %v36 = vsel %vm35, %v33, %v20
  %v37 = vsel %vm35, %v34, %v21
  %vm38 = vcmask 1042432
  %v39 = vsel %vm38, %v36, %v16
  %v40 = vsel %vm38, %v37, %v17
  %vm41 = vcmask 1043456
  %v42 = vsel %vm41, %v39, %v24
  %v43 = vsel %vm41, %v40, %v25
  %vm44 = vcmask 1044480
  %v45 = vsel %vm44, %v42, %v28
  %v46 = vsel %vm44, %v43, %v29
  %vm47 = vcmask 21504
  %48 = vst.msk [vmem:[%s1] sm:$0x3f] %vm47, %v45
  %49 = vst.msk [vmem:[%s1 + $0x8] sm:$0x3f] %vm47, %v46
  // Predicated region
  $region6: #{tpu_custom_call.1} parent=0 // pred_check
    _
  $region7: #{tpu_custom_call.1} parent=0 // pred_check_branch
    %51 = sbr.rel (0) target = $region9
  $region8: #{tpu_custom_call.1} parent=0 // pred_region
    _
  $region9: #{tpu_custom_call.1} parent=0 // pred_fallthru
    _
  // Predicated region
  $region10: #{tpu_custom_call.1} parent=0 // pred_check
    _
  $region11: #{tpu_custom_call.1} parent=0 // pred_check_branch
    %53 = sbr.rel (0) target = $region13
  $region12: #{tpu_custom_call.1} parent=0 // pred_region
    _
  $region13: #{tpu_custom_call.1} parent=0 // pred_fallthru
    _

</llo_original>
